<compile_context>
chip_gen: v6e
topology: v6e:2x2x1
jax: 0.10.0
libtpu: 0.0.40
codegen_flags: <defaults>
</compile_context>

<pallas_src>
import functools

import jax
import jax.numpy as jnp
from jax.experimental import pallas as pl
from jax.experimental.pallas import tpu as pltpu


def _chomp_copy_kernel(x_ref, o_ref, *, start, t_out):
    # x_ref: (r_tile, T) tile; o_ref: (r_tile, t_out) tile.
    # `start` / `t_out` are static Python ints -> static lane slice.
    o_ref[...] = x_ref[:, start:start + t_out]


def _sublane_pack(dtype) -> int:
    # Sub-32-bit dtypes pack along sublanes: 8 rows for 4-byte dtypes,
    # 16 for 2-byte, 32 for 1-byte.
    itemsize = jnp.dtype(dtype).itemsize
    return max(8, 32 // max(1, itemsize))


def _vmem_capacity_bytes() -> int:
    """Per-TensorCore VMEM capacity; conservative 64 MiB (v7x) fallback."""
    try:
        return int(pltpu.get_tpu_info().vmem_capacity_bytes)
    except Exception:
        return 64 * 1024 * 1024


def _pick_r_tile(R, T, t_out, dtype, budget_bytes):
    """Largest row tile (multiple of the sublane pack) fitting the budget,
    but split into >=2 blocks when possible so v7x's two TCs both get work."""
    itemsize = jnp.dtype(dtype).itemsize
    sub = _sublane_pack(dtype)
    # Double-buffered input (r x T) + output (r x t_out) per grid step.
    per_row_bytes = 2 * (T + t_out) * itemsize
    r = max(1, budget_bytes // max(1, per_row_bytes))
    r = min(r, R)
    if r >= R and R > sub:
        # Everything fits in one block: still split so the "parallel" grid
        # axis has >=2 steps (megacore sharding on v7x; harmless elsewhere).
        r = -(-R // 2)  # ceil(R / 2)
    if r >= R:
        return R  # full row dim -> always a legal block shape
    r = max(sub, (r // sub) * sub)
    return min(r, R)


def chomp1d(x, chomp_size, symm_chomp, *, r_tile=None):
    """Pallas equivalent of Chomp1d.forward.  x: (N, C, T)."""
    if chomp_size == 0:
        return x
    if symm_chomp:
        assert chomp_size % 2 == 0, "If symmetric chomp, chomp size needs to be even"
        start = chomp_size // 2
    else:
        start = 0

    N, C, T = x.shape
    t_out = T - chomp_size
    assert t_out > 0, "chomp_size must be smaller than the time dimension"

    R = N * C
    itemsize = jnp.dtype(x.dtype).itemsize

    # Generation-aware sizing: ~3/8 of VMEM for the double-buffered in+out
    # tiles (48 MiB on 128-MiB v5e/v6e, 24 MiB on 64-MiB v7x), with the scoped
    # limit a little above that.
    vmem_cap = _vmem_capacity_bytes()
    tile_budget = (vmem_cap * 3) // 8
    vmem_limit = int(min(tile_budget + (16 << 20), (vmem_cap * 3) // 4))

    if r_tile is None:
        r_tile = _pick_r_tile(R, T, t_out, x.dtype, tile_budget)
    r_tile = int(min(r_tile, R))

    # Free reshape: NCL layout is contiguous over (N*C, T).
    x2 = x.reshape(R, T)
    grid = (pl.cdiv(R, r_tile),)

    kernel = functools.partial(_chomp_copy_kernel, start=start, t_out=t_out)

    out2 = pl.pallas_call(
        kernel,
        out_shape=jax.ShapeDtypeStruct((R, t_out), x.dtype),
        grid_spec=pltpu.PrefetchScalarGridSpec(
            num_scalar_prefetch=0,
            grid=grid,
            in_specs=[
                # (r_tile, T): row-tiled, full time axis (last dim = full array
                # dim, so the (8,128) block constraint is satisfied for any T).
                pl.BlockSpec((r_tile, T), lambda i: (i, 0)),
            ],
            # (r_tile, t_out): last dim equals the full output time extent, so
            # stores are contiguous full rows; ragged last row block is masked.
            out_specs=pl.BlockSpec((r_tile, t_out), lambda i: (i, 0)),
        ),
        compiler_params=pltpu.CompilerParams(
            dimension_semantics=("parallel",),
            vmem_limit_bytes=vmem_limit,
        ),
        cost_estimate=pl.CostEstimate(
            flops=0,
            transcendentals=0,
            bytes_accessed=int(R * (T + t_out) * itemsize),
        ),
    )(x2)

    return out2.reshape(N, C, t_out)


if __name__ == "__main__":
    key = jax.random.PRNGKey(0)

    # --- Case 1/2/3: toy shapes, symmetric / causal / no-op ------------------
    N, C, T = 2, 4, 16
    x = jax.random.normal(key, (N, C, T), dtype=jnp.float32)

    chomp_size = 4
    out_symm = chomp1d(x, chomp_size, symm_chomp=True)
    jax.block_until_ready(out_symm)
    ref_symm = x[:, :, chomp_size // 2: T - chomp_size // 2]
    assert out_symm.shape == (N, C, T - chomp_size)
    assert jnp.array_equal(out_symm, ref_symm)

    out_causal = chomp1d(x, chomp_size, symm_chomp=False)
    jax.block_until_ready(out_causal)
    ref_causal = x[:, :, : T - chomp_size]
    assert out_causal.shape == (N, C, T - chomp_size)
    assert jnp.array_equal(out_causal, ref_causal)

    out_noop = chomp1d(x, 0, symm_chomp=False)
    jax.block_until_ready(out_noop)
    assert jnp.array_equal(out_noop, x)

    # --- Case 4: row-tiled path, explicit small tile (ragged last block) ----
    N2, C2, T2 = 2, 20, 160
    x2 = jax.random.normal(jax.random.PRNGKey(0), (N2, C2, T2), dtype=jnp.float32)
    chomp2 = 6
    out_tiled = chomp1d(x2, chomp2, symm_chomp=False, r_tile=8)
    jax.block_until_ready(out_tiled)
    assert out_tiled.shape == (N2, C2, T2 - chomp2)
    assert jnp.array_equal(out_tiled, x2[:, :, : T2 - chomp2])

    # --- Case 5: same shape, auto tile sizing (>=2 parallel blocks) ---------
    out_auto = chomp1d(x2, chomp2, symm_chomp=False)
    jax.block_until_ready(out_auto)
    assert jnp.array_equal(out_auto, x2[:, :, : T2 - chomp2])

    # --- Case 6: bf16, symmetric chomp, tiled rows ---------------------------
    N3, C3, T3 = 1, 24, 192
    x3 = jax.random.normal(jax.random.PRNGKey(0), (N3, C3, T3)).astype(jnp.bfloat16)
    chomp3 = 8
    out_bf16 = chomp1d(x3, chomp3, symm_chomp=True, r_tile=16)
    jax.block_until_ready(out_bf16)
    ref_bf16 = x3[:, :, chomp3 // 2: T3 - chomp3 // 2]
    assert out_bf16.shape == (N3, C3, T3 - chomp3)
    assert jnp.array_equal(out_bf16, ref_bf16)

    print("KERNEL_OK")
</pallas_src>

<mosaic_0001>
module attributes {stable_mosaic.version = 11 : i64} {
  func.func @_chomp_copy_kernel(%arg0: i32, %arg1: memref<8x16xf32, #tpu.memory_space<vmem>>, %arg2: memref<8x12xf32, #tpu.memory_space<vmem>>) attributes {dimension_semantics = [#tpu.dimension_semantics<parallel>], iteration_bounds = array<i64: 1>, scalar_prefetch = 0 : i64, scratch_operands = 0 : i64, tpu.core_type = #tpu.core_type<tc>, window_params = [{transform_indices = @transform_0, window_bounds = array<i64: 8, 16>}, {transform_indices = @transform_1, window_bounds = array<i64: 8, 12>}]} {
    %c0 = arith.constant 0 : index
    %c2 = arith.constant 2 : index
    %0 = vector.load %arg1[%c0, %c2] : memref<8x16xf32, #tpu.memory_space<vmem>>, vector<8x12xf32>
    %c0_0 = arith.constant 0 : index
    %c0_1 = arith.constant 0 : index
    %1 = vector.load %arg2[%c0_0, %c0_1] : memref<8x12xf32, #tpu.memory_space<vmem>>, vector<8x12xf32>
    tpu.vector_store %arg2[%c0_0, %c0_1], %0 {strides = array<i32>} : memref<8x12xf32, #tpu.memory_space<vmem>>, vector<8x12xf32>,
    return
  }
  func.func @transform_0(%arg0: i32) -> (i32, i32) {
    %c0_i32 = arith.constant 0 : i32
    %c0_i32_0 = arith.constant 0 : i32
    return %arg0, %c0_i32 : i32, i32
  }
  func.func @transform_1(%arg0: i32) -> (i32, i32) {
    %c0_i32 = arith.constant 0 : i32
    %c0_i32_0 = arith.constant 0 : i32
    return %arg0, %c0_i32 : i32, i32
  }
}

</mosaic_0001>

<llo_original>
// kernel: tpu_custom_call.1
$region0: #{tpu_custom_call.1}
  #allocation0 [shape = 'u32[]', space=smem, size = 0x4, offset = 0x4, fixed_abs, tag = 'smem constant byte address 0x4 - core index']
  #allocation1 [shape = 'u32[144,128]{1,0:T(1,128)}', space=vmem, size = 0x12000, scoped, tag = 'internal scratch']
  %s0 = inlined_call_operand.hbm [shape: f32[8,16], index: 0, kind: input, shape index: {}]
  %s1 = inlined_call_operand.hbm [shape: f32[8,12], index: 1, kind: output, shape index: {}]
  %s2 = sld [smem:[#allocation0]]
  $region18: #{tpu_custom_call.1} parent=0
    _
  %s4 = ssub.s32 1, %s2
  %s5 = scalar_select 0, %s4, %s2
  $region1: #{tpu_custom_call.1} parent=0
    #allocation2 [shape = 'u8[4096]{0}', space=vmem, size = 0x1000, scoped, tag = 'input window, operand 0, single buffered']
    #allocation3 [shape = 's32[1]{0}', space=sflag, size = 0x4, scoped, tag = 'scoped memory for tpu_custom_call.1']
    #allocation4 [shape = 's32[1]{0}', space=sflag, size = 0x4, scoped, tag = 'scoped memory for tpu_custom_call.1']
    #allocation5 [shape = 'u8[4096]{0}', space=vmem, size = 0x1000, scoped, tag = 'output window, operand 0, single buffered']
    %6 = vsyncpa [#allocation3], 0
    %7 = vsyncpa [#allocation4], 0
    // Predicated region
    $region2: #{tpu_custom_call.1} parent=1 // pred_check
      _
    $region3: #{tpu_custom_call.1} parent=1 // pred_check_branch
      %9 = sbr.rel (0) target = $region5
    $region4: #{tpu_custom_call.1} parent=1 // pred_region
      %s11 = ssub.s32 128, 128
      %12 = vsyncadd [#allocation3], %s11
      %s14 = sshll.u32 [#allocation2], 4
      %s15 = int_to_ptr.vmem [resolvable:$true] %s14
      %17 = dma.hbm_to_vmem [thread:$0]  %s0, 128, %s15, [#allocation3]
    $region5: #{tpu_custom_call.1} parent=1 // pred_fallthru
      _
    // Predicated region
    $region6: #{tpu_custom_call.1} parent=1 // pred_check
      _
    $region7: #{tpu_custom_call.1} parent=1 // pred_check_branch
      %19 = sbr.rel (0) target = $region9
    $region8: #{tpu_custom_call.1} parent=1 // pred_region
      %20 = dma.done [#allocation3], 128
    $region9: #{tpu_custom_call.1} parent=1 // pred_fallthru
      _
    %v21 = vld [vmem:[#allocation2] sm:$0xff]
    %23 = vrot.lane.b32.xlu0 %v21, 126
    %v24 = vpop.permute.xlu0 %23
    %vm26 = vcmask 97280
    %27 = vst.msk [vmem:[#allocation5] sm:$0xff] %vm26, %v24
    // Predicated region
    $region10: #{tpu_custom_call.1} parent=1 // pred_check
      _
    $region11: #{tpu_custom_call.1} parent=1 // pred_check_branch
      %29 = sbr.rel (0) target = $region13
    $region12: #{tpu_custom_call.1} parent=1 // pred_region
      %s31 = ssub.s32 128, 128
      %32 = vsyncadd [#allocation4], %s31
      %s34 = sshll.u32 [#allocation5], 4
      %s35 = int_to_ptr.vmem [resolvable:$true] %s34
      %37 = dma.vmem_to_hbm [thread:$0]  %s35, 128, %s1, [#allocation4]
    $region13: #{tpu_custom_call.1} parent=1 // pred_fallthru
      _
    // Predicated region
    $region14: #{tpu_custom_call.1} parent=1 // pred_check
      _
    $region15: #{tpu_custom_call.1} parent=1 // pred_check_branch
      %39 = sbr.rel (0) target = $region17
    $region16: #{tpu_custom_call.1} parent=1 // pred_region
      %40 = dma.done [#allocation4], 128
    $region17: #{tpu_custom_call.1} parent=1 // pred_fallthru
      _
    %41 = vsyncpa [#allocation3], 1
    %42 = vsyncpa [#allocation4], 1

</llo_original>
